<compile_context>
chip_gen: v6e
topology: v6e:2x2x1
jax: 0.10.0
libtpu: 0.0.40
codegen_flags: <defaults>
</compile_context>

<pallas_src>
import functools

import jax
import jax.numpy as jnp
import numpy as np
from jax.experimental import pallas as pl
from jax.experimental.pallas import tpu as pltpu


def _round_up(x, m):
    return ((x + m - 1) // m) * m


# ----------------------------------------------------------------------------
# Kernel
# ----------------------------------------------------------------------------
def _mlp_kernel(n_hidden_layers, x_ref, *refs):
    """Fused MLP forward for one batch tile.

    refs = (w0, b0, w1, b1, ..., w_out, b_out, out_ref)
    Hidden layers: Linear -> (dropout = identity, eval mode) -> sigmoid.
    Final layer:   Linear only.
    """
    out_ref = refs[-1]
    params = refs[:-1]

    act_dtype = x_ref.dtype
    cur = x_ref[...]

    # Hidden layers: MXU matmul (f32 accumulation) + EUP tanh-form sigmoid.
    for i in range(n_hidden_layers):
        w = params[2 * i][...]
        b = params[2 * i + 1][...]
        z = jnp.dot(cur, w, preferred_element_type=jnp.float32) + b
        # dropout: eval-mode identity (see TODO(synk) above)
        # sigmoid(z) == 0.5 * tanh(0.5 * z) + 0.5  -> stays on the EUP slot
        cur = (0.5 * jnp.tanh(0.5 * z) + 0.5).astype(act_dtype)

    # Output layer (no activation), lane-dense (padded) output slab.
    w_out = params[-2][...]
    b_out = params[-1][...]
    out = jnp.dot(cur, w_out, preferred_element_type=jnp.float32) + b_out
    out_ref[...] = out.astype(out_ref.dtype)


# ----------------------------------------------------------------------------
# Wrapper
# ----------------------------------------------------------------------------
def general_perceptron_forward(x, weights, biases, *, tile_b=256):
    """Run the fused MLP Pallas kernel.

    x:       (B, n_param)
    weights: list of (in, out) arrays  (len == n_hidden_layers + 1)
    biases:  list of (1, out) arrays
    """
    B, n_param = x.shape
    n_hidden = len(weights) - 1
    n_out = weights[-1].shape[1]
    dtype = x.dtype

    # ---- Pad all feature dims to multiples of 128 (lane-dense MXU / stores).
    # Zero padding is exact: padded hidden units get pre-act 0 -> sigmoid 0.5,
    # but the next layer's padded weight rows are 0, so they contribute 0.
    dims = [n_param] + [w.shape[1] for w in weights]
    pdims = [_round_up(d, 128) for d in dims]
    in_pad, out_pad = pdims[0], pdims[-1]

    w_p, b_p = [], []
    for li, (w, b) in enumerate(zip(weights, biases)):
        ki, ko = pdims[li], pdims[li + 1]
        wp = jnp.zeros((ki, ko), w.dtype).at[: w.shape[0], : w.shape[1]].set(w)
        bp = jnp.zeros((1, ko), b.dtype).at[:, : b.shape[1]].set(b.reshape(1, -1))
        w_p.append(wp)
        b_p.append(bp)

    # ---- Batch tiling: big, sublane-aligned tiles; pad batch to tile multiple.
    tile = min(tile_b, _round_up(B, 8))
    Bp = _round_up(B, tile)
    if (Bp, in_pad) != (B, n_param):
        x_p = jnp.zeros((Bp, in_pad), dtype).at[:B, :n_param].set(x)
    else:
        x_p = x
    grid = (Bp // tile,)

    # Interleave params: w0, b0, w1, b1, ...
    params = []
    for w, b in zip(w_p, b_p):
        params.append(w)
        params.append(b)

    # ---- BlockSpecs: tile over batch; params are fully resident (constant
    # block index -> fetched once, not re-DMA'd per grid step).
    x_spec = pl.BlockSpec((tile, in_pad), lambda i: (i, 0))
    param_specs = [pl.BlockSpec(p.shape, lambda i: (0, 0)) for p in params]
    out_spec = pl.BlockSpec((tile, out_pad), lambda i: (i, 0))

    # ---- VMEM budget: params (double-buffered) + x/out pipeline buffers
    # + f32 intermediate activations, with headroom; capped at 64 MiB (v7x).
    itemsize = jnp.dtype(dtype).itemsize
    resident = 2 * sum(p.size * p.dtype.itemsize for p in params)
    io_bytes = 2 * (tile * in_pad + tile * out_pad) * itemsize
    act_bytes = 2 * tile * max(pdims) * 4
    vmem_limit = int(1.5 * (resident + io_bytes + act_bytes))
    vmem_limit = min(64 * 1024 * 1024, max(32 * 1024 * 1024, vmem_limit))

    kernel = functools.partial(_mlp_kernel, n_hidden)

    out = pl.pallas_call(
        kernel,
        out_shape=jax.ShapeDtypeStruct((Bp, out_pad), dtype),
        grid_spec=pltpu.PrefetchScalarGridSpec(
            num_scalar_prefetch=0,
            grid=grid,
            in_specs=[x_spec] + param_specs,
            out_specs=out_spec,
        ),
        compiler_params=pltpu.CompilerParams(
            dimension_semantics=("parallel",),
            vmem_limit_bytes=vmem_limit,
        ),
    )(x_p, *params)

    return out[:B, :n_out]


# ----------------------------------------------------------------------------
# Deterministic parameter construction (mirrors GeneralPerceptron.__init__)
# ----------------------------------------------------------------------------
def init_params(key, n_param, n_out, n_layers, layer_contents=None):
    layer_contents = [n_param] * n_layers if layer_contents is None else layer_contents
    dims = [n_param] + list(layer_contents) + [n_out]
    weights, biases = [], []
    for i in range(len(dims) - 1):
        key, wk, bk = jax.random.split(key, 3)
        bound = 1.0 / np.sqrt(dims[i])
        w = jax.random.uniform(wk, (dims[i], dims[i + 1]),
                               minval=-bound, maxval=bound, dtype=jnp.float32)
        b = jax.random.uniform(bk, (1, dims[i + 1]),
                               minval=-bound, maxval=bound, dtype=jnp.float32)
        weights.append(w)
        biases.append(b)
    return weights, biases


def reference_forward(x, weights, biases):
    cur = x
    for w, b in zip(weights[:-1], biases[:-1]):
        cur = jax.nn.sigmoid(cur @ w + b)   # dropout = identity (eval mode)
    return cur @ weights[-1] + biases[-1]


# ----------------------------------------------------------------------------
# Main
# ----------------------------------------------------------------------------
if __name__ == "__main__":
    key = jax.random.PRNGKey(0)

    # GeneralPerceptron(n_param=32, n_out=1, n_layers=2) -> 32->32, 32->32, 32->1
    batch = 16
    n_param = 32
    n_out = 1
    n_layers = 2

    key, xk, pk = jax.random.split(key, 3)
    x = jax.random.normal(xk, (batch, n_param), dtype=jnp.float32)
    weights, biases = init_params(pk, n_param, n_out, n_layers)

    ref = reference_forward(x, weights, biases)

    # f32 path (tight tolerance).
    out = general_perceptron_forward(x, weights, biases)
    out = jax.block_until_ready(out)
    assert out.shape == (batch, n_out)
    np.testing.assert_allclose(np.asarray(out), np.asarray(ref),
                               rtol=1e-5, atol=1e-5)

    # bf16 path (full-rate MXU inputs, f32 accumulation) — loose tolerance.
    x_bf = x.astype(jnp.bfloat16)
    w_bf = [w.astype(jnp.bfloat16) for w in weights]
    b_bf = [b.astype(jnp.bfloat16) for b in biases]
    out_bf = general_perceptron_forward(x_bf, w_bf, b_bf)
    out_bf = jax.block_until_ready(out_bf)
    np.testing.assert_allclose(np.asarray(out_bf.astype(jnp.float32)),
                               np.asarray(ref), rtol=5e-2, atol=5e-2)

    print("KERNEL_OK")
</pallas_src>

<mosaic_0001>
module attributes {stable_mosaic.version = 11 : i64} {
  func.func @_mlp_kernel(%arg0: i32, %arg1: memref<16x128xf32, #tpu.memory_space<vmem>>, %arg2: memref<128x128xf32, #tpu.memory_space<vmem>>, %arg3: memref<1x128xf32, #tpu.memory_space<vmem>>, %arg4: memref<128x128xf32, #tpu.memory_space<vmem>>, %arg5: memref<1x128xf32, #tpu.memory_space<vmem>>, %arg6: memref<128x128xf32, #tpu.memory_space<vmem>>, %arg7: memref<1x128xf32, #tpu.memory_space<vmem>>, %arg8: memref<16x128xf32, #tpu.memory_space<vmem>>) attributes {dimension_semantics = [#tpu.dimension_semantics<parallel>], iteration_bounds = array<i64: 1>, scalar_prefetch = 0 : i64, scratch_operands = 0 : i64, tpu.core_type = #tpu.core_type<tc>, window_params = [{transform_indices = @transform_0, window_bounds = array<i64: 16, 128>}, {pipeline_mode = #tpu.pipeline_mode<synchronous>, transform_indices = @transform_1, window_bounds = array<i64: 128, 128>}, {pipeline_mode = #tpu.pipeline_mode<synchronous>, transform_indices = @transform_2, window_bounds = array<i64: 1, 128>}, {pipeline_mode = #tpu.pipeline_mode<synchronous>, transform_indices = @transform_3, window_bounds = array<i64: 128, 128>}, {pipeline_mode = #tpu.pipeline_mode<synchronous>, transform_indices = @transform_4, window_bounds = array<i64: 1, 128>}, {pipeline_mode = #tpu.pipeline_mode<synchronous>, transform_indices = @transform_5, window_bounds = array<i64: 128, 128>}, {pipeline_mode = #tpu.pipeline_mode<synchronous>, transform_indices = @transform_6, window_bounds = array<i64: 1, 128>}, {transform_indices = @transform_7, window_bounds = array<i64: 16, 128>}]} {
    %c0 = arith.constant 0 : index
    %c0_0 = arith.constant 0 : index
    %0 = vector.load %arg1[%c0, %c0_0] : memref<16x128xf32, #tpu.memory_space<vmem>>, vector<16x128xf32>
    %c0_1 = arith.constant 0 : index
    %c0_2 = arith.constant 0 : index
    %1 = vector.load %arg2[%c0_1, %c0_2] : memref<128x128xf32, #tpu.memory_space<vmem>>, vector<128x128xf32>
    %c0_3 = arith.constant 0 : index
    %c0_4 = arith.constant 0 : index
    %2 = vector.load %arg3[%c0_3, %c0_4] : memref<1x128xf32, #tpu.memory_space<vmem>>, vector<1x128xf32>
    %cst = arith.constant dense<0.000000e+00> : vector<16x128xf32>
    %3 = tpu.matmul %0, %1, %cst {dimension_numbers = #tpu.dot_dimension_numbers<[1], [0], [0], [1], [0, 0, 1, 1], [], []>} : vector<16x128xf32>, vector<128x128xf32>, vector<16x128xf32> -> vector<16x128xf32>
    %4 = vector.broadcast %2 : vector<1x128xf32> to vector<16x128xf32>
    %5 = arith.addf %3, %4 : vector<16x128xf32>
    %cst_5 = arith.constant 5.000000e-01 : f32
    %6 = vector.broadcast %cst_5 : f32 to vector<16x128xf32>
    %7 = arith.mulf %6, %5 : vector<16x128xf32>
    %8 = math.tanh %7 : vector<16x128xf32>
    %cst_6 = arith.constant 5.000000e-01 : f32
    %9 = vector.broadcast %cst_6 : f32 to vector<16x128xf32>
    %10 = arith.mulf %9, %8 : vector<16x128xf32>
    %cst_7 = arith.constant 5.000000e-01 : f32
    %11 = vector.broadcast %cst_7 : f32 to vector<16x128xf32>
    %12 = arith.addf %10, %11 : vector<16x128xf32>
    %c0_8 = arith.constant 0 : index
    %c0_9 = arith.constant 0 : index
    %13 = vector.load %arg4[%c0_8, %c0_9] : memref<128x128xf32, #tpu.memory_space<vmem>>, vector<128x128xf32>
    %c0_10 = arith.constant 0 : index
    %c0_11 = arith.constant 0 : index
    %14 = vector.load %arg5[%c0_10, %c0_11] : memref<1x128xf32, #tpu.memory_space<vmem>>, vector<1x128xf32>
    %cst_12 = arith.constant dense<0.000000e+00> : vector<16x128xf32>
    %15 = tpu.matmul %12, %13, %cst_12 {dimension_numbers = #tpu.dot_dimension_numbers<[1], [0], [0], [1], [0, 0, 1, 1], [], []>} : vector<16x128xf32>, vector<128x128xf32>, vector<16x128xf32> -> vector<16x128xf32>
    %16 = vector.broadcast %14 : vector<1x128xf32> to vector<16x128xf32>
    %17 = arith.addf %15, %16 : vector<16x128xf32>
    %cst_13 = arith.constant 5.000000e-01 : f32
    %18 = vector.broadcast %cst_13 : f32 to vector<16x128xf32>
    %19 = arith.mulf %18, %17 : vector<16x128xf32>
    %20 = math.tanh %19 : vector<16x128xf32>
    %cst_14 = arith.constant 5.000000e-01 : f32
    %21 = vector.broadcast %cst_14 : f32 to vector<16x128xf32>
    %22 = arith.mulf %21, %20 : vector<16x128xf32>
    %cst_15 = arith.constant 5.000000e-01 : f32
    %23 = vector.broadcast %cst_15 : f32 to vector<16x128xf32>
    %24 = arith.addf %22, %23 : vector<16x128xf32>
    %c0_16 = arith.constant 0 : index
    %c0_17 = arith.constant 0 : index
    %25 = vector.load %arg6[%c0_16, %c0_17] : memref<128x128xf32, #tpu.memory_space<vmem>>, vector<128x128xf32>
    %c0_18 = arith.constant 0 : index
    %c0_19 = arith.constant 0 : index
    %26 = vector.load %arg7[%c0_18, %c0_19] : memref<1x128xf32, #tpu.memory_space<vmem>>, vector<1x128xf32>
    %cst_20 = arith.constant dense<0.000000e+00> : vector<16x128xf32>
    %27 = tpu.matmul %24, %25, %cst_20 {dimension_numbers = #tpu.dot_dimension_numbers<[1], [0], [0], [1], [0, 0, 1, 1], [], []>} : vector<16x128xf32>, vector<128x128xf32>, vector<16x128xf32> -> vector<16x128xf32>
    %28 = vector.broadcast %26 : vector<1x128xf32> to vector<16x128xf32>
    %29 = arith.addf %27, %28 : vector<16x128xf32>
    %c0_21 = arith.constant 0 : index
    %c0_22 = arith.constant 0 : index
    %30 = vector.load %arg8[%c0_21, %c0_22] : memref<16x128xf32, #tpu.memory_space<vmem>>, vector<16x128xf32>
    tpu.vector_store %arg8[%c0_21, %c0_22], %29 {strides = array<i32>} : memref<16x128xf32, #tpu.memory_space<vmem>>, vector<16x128xf32>,
    return
  }
  func.func @transform_0(%arg0: i32) -> (i32, i32) {
    %c0_i32 = arith.constant 0 : i32
    %c0_i32_0 = arith.constant 0 : i32
    return %arg0, %c0_i32 : i32, i32
  }
  func.func @transform_1(%arg0: i32) -> (i32, i32) {
    %c0_i32 = arith.constant 0 : i32
    %c0_i32_0 = arith.constant 0 : i32
    %c0_i32_1 = arith.constant 0 : i32
    return %c0_i32, %c0_i32_0 : i32, i32
  }
  func.func @transform_2(%arg0: i32) -> (i32, i32) {
    %c0_i32 = arith.constant 0 : i32
    %c0_i32_0 = arith.constant 0 : i32
    %c0_i32_1 = arith.constant 0 : i32
    return %c0_i32, %c0_i32_0 : i32, i32
  }
  func.func @transform_3(%arg0: i32) -> (i32, i32) {
    %c0_i32 = arith.constant 0 : i32
    %c0_i32_0 = arith.constant 0 : i32
    %c0_i32_1 = arith.constant 0 : i32
    return %c0_i32, %c0_i32_0 : i32, i32
  }
  func.func @transform_4(%arg0: i32) -> (i32, i32) {
    %c0_i32 = arith.constant 0 : i32
    %c0_i32_0 = arith.constant 0 : i32
    %c0_i32_1 = arith.constant 0 : i32
    return %c0_i32, %c0_i32_0 : i32, i32
  }
  func.func @transform_5(%arg0: i32) -> (i32, i32) {
    %c0_i32 = arith.constant 0 : i32
    %c0_i32_0 = arith.constant 0 : i32
    %c0_i32_1 = arith.constant 0 : i32
    return %c0_i32, %c0_i32_0 : i32, i32
  }
  func.func @transform_6(%arg0: i32) -> (i32, i32) {
    %c0_i32 = arith.constant 0 : i32
    %c0_i32_0 = arith.constant 0 : i32
    %c0_i32_1 = arith.constant 0 : i32
    return %c0_i32, %c0_i32_0 : i32, i32
  }
  func.func @transform_7(%arg0: i32) -> (i32, i32) {
    %c0_i32 = arith.constant 0 : i32
    %c0_i32_0 = arith.constant 0 : i32
    return %arg0, %c0_i32 : i32, i32
  }
}

</mosaic_0001>

<llo_original>
// kernel: tpu_custom_call.1
$region0: #{tpu_custom_call.1}
  #allocation0 [shape = 'u32[]', space=smem, size = 0x4, offset = 0x4, fixed_abs, tag = 'smem constant byte address 0x4 - core index']
  #allocation1 [shape = 'u32[144,128]{1,0:T(1,128)}', space=vmem, size = 0x12000, scoped, tag = 'internal scratch']
  %s0 = inlined_call_operand.hbm [shape: f32[16,128], index: 0, kind: input, shape index: {}]
  %s1 = inlined_call_operand.hbm [shape: f32[128,128], index: 1, kind: input, shape index: {}]
  %s2 = inlined_call_operand.vmem [shape: f32[1,128], index: 2, kind: input, shape index: {}]
  %s3 = inlined_call_operand.hbm [shape: f32[128,128], index: 3, kind: input, shape index: {}]
  %s4 = inlined_call_operand.vmem [shape: f32[1,128], index: 4, kind: input, shape index: {}]
  %s5 = inlined_call_operand.hbm [shape: f32[128,128], index: 5, kind: input, shape index: {}]
  %s6 = inlined_call_operand.vmem [shape: f32[1,128], index: 6, kind: input, shape index: {}]
  %s7 = inlined_call_operand.hbm [shape: f32[16,128], index: 7, kind: output, shape index: {}]
  %s8 = sld [smem:[#allocation0]]
  $region54: #{tpu_custom_call.1} parent=0
    _
  %s10 = ssub.s32 1, %s8
  %s11 = scalar_select 0, %s10, %s8
  $region1: #{tpu_custom_call.1} parent=0
    #allocation2 [shape = 'u8[8192]{0}', space=vmem, size = 0x2000, scoped, tag = 'input window, operand 0, single buffered']
    #allocation3 [shape = 's32[1]{0}', space=sflag, size = 0x4, scoped, tag = 'scoped memory for tpu_custom_call.1']
    #allocation4 [shape = 's32[1]{0}', space=sflag, size = 0x4, scoped, tag = 'scoped memory for tpu_custom_call.1']
    #allocation5 [shape = 'u8[65536]{0}', space=vmem, size = 0x10000, scoped, tag = 'input window, operand 1, single buffered']
    #allocation6 [shape = 's32[1]{0}', space=sflag, size = 0x4, scoped, tag = 'scoped memory for tpu_custom_call.1']
    #allocation7 [shape = 'u8[65536]{0}', space=vmem, size = 0x10000, scoped, tag = 'input window, operand 3, single buffered']
    #allocation8 [shape = 'u8[65536]{0}', space=vmem, size = 0x10000, scoped, tag = 'input window, operand 5, single buffered']
    #allocation9 [shape = 's32[1]{0}', space=sflag, size = 0x4, scoped, tag = 'scoped memory for tpu_custom_call.1']
    #allocation10 [shape = 'u8[8192]{0}', space=vmem, size = 0x2000, scoped, tag = 'output window, operand 0, single buffered']
    %12 = vsyncpa [#allocation3], 0
    %13 = vsyncpa [#allocation6], 0
    %14 = vsyncpa [#allocation9], 0
    %15 = vsyncpa [#allocation4], 0
    // Predicated region
    $region2: #{tpu_custom_call.1} parent=1 // pred_check
      _
    $region3: #{tpu_custom_call.1} parent=1 // pred_check_branch
      %17 = sbr.rel (0) target = $region5
    $region4: #{tpu_custom_call.1} parent=1 // pred_region
      %s19 = ssub.s32 256, 256
      %20 = vsyncadd [#allocation3], %s19
      %s21 = sshll.u32 [#allocation2], 4
      %s22 = int_to_ptr.vmem [resolvable:$true] %s21
      %27 = dma.hbm_to_vmem [thread:$0]  %s0, 256, %s22, [#allocation3], 128, 128, 8
    $region5: #{tpu_custom_call.1} parent=1 // pred_fallthru
      _
    // Predicated region
    $region6: #{tpu_custom_call.1} parent=1 // pred_check
      _
    $region7: #{tpu_custom_call.1} parent=1 // pred_check_branch
      %29 = sbr.rel (0) target = $region9
    $region8: #{tpu_custom_call.1} parent=1 // pred_region
      %s31 = ssub.s32 2048, 2048
      %32 = vsyncadd [#allocation6], %s31
      %s33 = sshll.u32 [#allocation5], 4
      %s34 = int_to_ptr.vmem [resolvable:$true] %s33
      %39 = dma.hbm_to_vmem [thread:$0]  %s1, 2048, %s34, [#allocation6], 128, 128, 8
    $region9: #{tpu_custom_call.1} parent=1 // pred_fallthru
      _
    // Predicated region
    $region10: #{tpu_custom_call.1} parent=1 // pred_check
      _
    $region11: #{tpu_custom_call.1} parent=1 // pred_check_branch
      %41 = sbr.rel (0) target = $region13
    $region12: #{tpu_custom_call.1} parent=1 // pred_region
      _
    $region13: #{tpu_custom_call.1} parent=1 // pred_fallthru
      _
    // Predicated region
    $region14: #{tpu_custom_call.1} parent=1 // pred_check
      _
    $region15: #{tpu_custom_call.1} parent=1 // pred_check_branch
      %43 = sbr.rel (0) target = $region17
    $region16: #{tpu_custom_call.1} parent=1 // pred_region
      %s45 = ssub.s32 2048, 2048
      %46 = vsyncadd [#allocation6], %s45
      %s47 = sshll.u32 [#allocation7], 4
      %s48 = int_to_ptr.vmem [resolvable:$true] %s47
      %53 = dma.hbm_to_vmem [thread:$0]  %s3, 2048, %s48, [#allocation6], 128, 128, 8
    $region17: #{tpu_custom_call.1} parent=1 // pred_fallthru
      _
    // Predicated region
    $region18: #{tpu_custom_call.1} parent=1 // pred_check
      _
    $region19: #{tpu_custom_call.1} parent=1 // pred_check_branch
      %55 = sbr.rel (0) target = $region21
    $region20: #{tpu_custom_call.1} parent=1 // pred_region
      _
    $region21: #{tpu_custom_call.1} parent=1 // pred_fallthru
      _
    // Predicated region
    $region22: #{tpu_custom_call.1} parent=1 // pred_check
      _
    $region23: #{tpu_custom_call.1} parent=1 // pred_check_branch
      %57 = sbr.rel (0) target = $region25
    $region24: #{tpu_custom_call.1} parent=1 // pred_region
      %s59 = ssub.s32 2048, 2048
      %60 = vsyncadd [#allocation9], %s59
      %s61 = sshll.u32 [#allocation8], 4
      %s62 = int_to_ptr.vmem [resolvable:$true] %s61
      %67 = dma.hbm_to_vmem [thread:$0]  %s5, 2048, %s62, [#allocation9], 128, 128, 8
    $region25: #{tpu_custom_call.1} parent=1 // pred_fallthru
      _
    // Predicated region
    $region26: #{tpu_custom_call.1} parent=1 // pred_check
      _
    $region27: #{tpu_custom_call.1} parent=1 // pred_check_branch
      %69 = sbr.rel (0) target = $region29
    $region28: #{tpu_custom_call.1} parent=1 // pred_region
      _
    $region29: #{tpu_custom_call.1} parent=1 // pred_fallthru
      _
    // Predicated region
    $region30: #{tpu_custom_call.1} parent=1 // pred_check
      _
    $region31: #{tpu_custom_call.1} parent=1 // pred_check_branch
      %71 = sbr.rel (0) target = $region33
    $region32: #{tpu_custom_call.1} parent=1 // pred_region
      %72 = dma.done [#allocation3], 256
    $region33: #{tpu_custom_call.1} parent=1 // pred_fallthru
      _
    // Predicated region
    $region34: #{tpu_custom_call.1} parent=1 // pred_check
      _
    $region35: #{tpu_custom_call.1} parent=1 // pred_check_branch
      %74 = sbr.rel (0) target = $region37
    $region36: #{tpu_custom_call.1} parent=1 // pred_region
      %75 = dma.done [#allocation6], 2048
    $region37: #{tpu_custom_call.1} parent=1 // pred_fallthru
      _
    // Predicated region
    $region38: #{tpu_custom_call.1} parent=1 // pred_check
      _
    $region39: #{tpu_custom_call.1} parent=1 // pred_check_branch
      %77 = sbr.rel (0) target = $region41
    $region40: #{tpu_custom_call.1} parent=1 // pred_region
      %78 = dma.done [#allocation6], 2048
    $region41: #{tpu_custom_call.1} parent=1 // pred_fallthru
      _
    // Predicated region
    $region42: #{tpu_custom_call.1} parent=1 // pred_check
      _
    $region43: #{tpu_custom_call.1} parent=1 // pred_check_branch
      %80 = sbr.rel (0) target = $region45
    $region44: #{tpu_custom_call.1} parent=1 // pred_region
      %81 = dma.done [#allocation9], 2048
    $region45: #{tpu_custom_call.1} parent=1 // pred_fallthru
      _
    %v82 = vld [vmem:[#allocation2] sm:$0xff]
    %v83 = vld [vmem:[#allocation2 + $0x8] sm:$0xff]
    %v84 = vld [vmem:[#allocation5] sm:$0xff]
    %v85 = vld [vmem:[#allocation5 + $0x8] sm:$0xff]
    %v86 = vld [vmem:[#allocation5 + $0x10] sm:$0xff]
    %v87 = vld [vmem:[#allocation5 + $0x18] sm:$0xff]
    %v88 = vld [vmem:[#allocation5 + $0x20] sm:$0xff]
    %v89 = vld [vmem:[#allocation5 + $0x28] sm:$0xff]
    %v90 = vld [vmem:[#allocation5 + $0x30] sm:$0xff]
    %v91 = vld [vmem:[#allocation5 + $0x38] sm:$0xff]
    %v92 = vld [vmem:[#allocation5 + $0x40] sm:$0xff]
    %v93 = vld [vmem:[#allocation5 + $0x48] sm:$0xff]
    %v94 = vld [vmem:[#allocation5 + $0x50] sm:$0xff]
    %v95 = vld [vmem:[#allocation5 + $0x58] sm:$0xff]
    %v96 = vld [vmem:[#allocation5 + $0x60] sm:$0xff]
    %v97 = vld [vmem:[#allocation5 + $0x68] sm:$0xff]
    %v98 = vld [vmem:[#allocation5 + $0x70] sm:$0xff]
    %v99 = vld [vmem:[#allocation5 + $0x78] sm:$0xff]
    %v100 = vld [vmem:[%s2] sm:$0x1]
    %v102 = vlaneseq
    %v103 = vshrl.u32 %v102, 7
    %v104 = vsub.s32 0, %v103
    %v105 = vrot.slane %v100, %v104
    %107 = vmatprep.subr.mxu0 0.0
    %108 = vmatpush1.msra.mxu0 %v99
    %109 = vmatprep.subr.mxu0 0.0
    %110 = vmatpush1.msra.mxu0 %v98
    %111 = vmatprep.subr.mxu0 0.0
    %112 = vmatpush1.msra.mxu0 %v97
    %113 = vmatprep.subr.mxu0 0.0
    %114 = vmatpush1.msra.mxu0 %v96
    %115 = vmatprep.subr.mxu0 0.0
    %116 = vmatpush1.msra.mxu0 %v95
    %117 = vmatprep.subr.mxu0 0.0
    %118 = vmatpush1.msra.mxu0 %v94
    %119 = vmatprep.subr.mxu0 0.0
    %120 = vmatpush1.msra.mxu0 %v93
    %121 = vmatprep.subr.mxu0 0.0
    %122 = vmatpush1.msra.mxu0 %v92
    %123 = vmatprep.subr.mxu0 0.0
    %124 = vmatpush1.msra.mxu0 %v91
    %125 = vmatprep.subr.mxu0 0.0
    %126 = vmatpush1.msra.mxu0 %v90
    %127 = vmatprep.subr.mxu0 0.0
    %128 = vmatpush1.msra.mxu0 %v89
    %129 = vmatprep.subr.mxu0 0.0
    %130 = vmatpush1.msra.mxu0 %v88
    %131 = vmatprep.subr.mxu0 0.0
    %132 = vmatpush1.msra.mxu0 %v87
    %133 = vmatprep.subr.mxu0 0.0
    %134 = vmatpush1.msra.mxu0 %v86
    %135 = vmatprep.subr.mxu0 0.0
    %136 = vmatpush1.msra.mxu0 %v85
    %137 = vmatprep.subr.mxu0 0.0
    %138 = vmatpush1.msra.mxu0 %v84
    %139 = vmatprep.subr.mxu0 0.0
    %140 = vmatpush2.msra.mxu0 0.0
    %141 = vmatprep.subr.mxu0 0.0
    %142 = vmatpush2.msra.mxu0 0.0
    %143 = vmatprep.subr.mxu0 0.0
    %144 = vmatpush2.msra.mxu0 0.0
    %145 = vmatprep.subr.mxu0 0.0
    %146 = vmatpush2.msra.mxu0 0.0
    %147 = vmatprep.subr.mxu0 0.0
    %148 = vmatpush2.msra.mxu0 0.0
    %149 = vmatprep.subr.mxu0 0.0
    %150 = vmatpush2.msra.mxu0 0.0
    %151 = vmatprep.subr.mxu0 0.0
    %152 = vmatpush2.msra.mxu0 0.0
    %153 = vmatprep.subr.mxu0 0.0
    %154 = vmatpush2.msra.mxu0 0.0
    %155 = vmatprep.subr.mxu0 0.0
    %156 = vmatpush2.msra.mxu0 0.0
    %157 = vmatprep.subr.mxu0 0.0
    %158 = vmatpush2.msra.mxu0 0.0
    %159 = vmatprep.subr.mxu0 0.0
    %160 = vmatpush2.msra.mxu0 0.0
    %161 = vmatprep.subr.mxu0 0.0
    %162 = vmatpush2.msra.mxu0 0.0
    %163 = vmatprep.subr.mxu0 0.0
    %164 = vmatpush2.msra.mxu0 0.0
    %165 = vmatprep.subr.mxu0 0.0
    %166 = vmatpush2.msra.mxu0 0.0
    %167 = vmatprep.subr.mxu0 0.0
    %168 = vmatpush2.msra.mxu0 0.0
    %169 = vmatprep.subr.mxu0 0.0
    %170 = vmatpush2.msra.mxu0 0.0
    %171 = vmatprep.mubr.f32.mxu0 0.0
    %172 = vmatmul.mubr.f32.gmra.mxu0 %v82
    %v173 = vpop.f32.mrf.mxu0
    %v174 = vadd.f32 %v105, %v173
    %v175 = vpop.f32.mrf.mxu0
    %176 = vmatprep.mubr.f32.mxu0 0.0
    %177 = vmatmul.mubr.f32.gmra.mxu0 %v83
    %v178 = vpop.f32.mrf.mxu0
    %v179 = vadd.f32 %v105, %v178
    %v180 = vpop.f32.mrf.mxu0
    %181 = vdwg.mxu0
    %v182 = vmul.f32 %v174, 0.5
    %v183 = vmul.f32 %v179, 0.5
    %v184 = vtanh.pop %v182
    %v185 = vtanh.pop %v183
    %v186 = vmul.f32 %v184, 0.5
    %v187 = vmul.f32 %v185, 0.5
    %v188 = vadd.f32 %v186, 0.5
    %v189 = vadd.f32 %v187, 0.5
    %v190 = vld [vmem:[#allocation7] sm:$0xff]
    %v191 = vld [vmem:[#allocation7 + $0x8] sm:$0xff]
    %v192 = vld [vmem:[#allocation7 + $0x10] sm:$0xff]
    %v193 = vld [vmem:[#allocation7 + $0x18] sm:$0xff]
    %v194 = vld [vmem:[#allocation7 + $0x20] sm:$0xff]
    %v195 = vld [vmem:[#allocation7 + $0x28] sm:$0xff]
    %v196 = vld [vmem:[#allocation7 + $0x30] sm:$0xff]
    %v197 = vld [vmem:[#allocation7 + $0x38] sm:$0xff]
    %v198 = vld [vmem:[#allocation7 + $0x40] sm:$0xff]
    %v199 = vld [vmem:[#allocation7 + $0x48] sm:$0xff]
    %v200 = vld [vmem:[#allocation7 + $0x50] sm:$0xff]
    %v201 = vld [vmem:[#allocation7 + $0x58] sm:$0xff]
    %v202 = vld [vmem:[#allocation7 + $0x60] sm:$0xff]
    %v203 = vld [vmem:[#allocation7 + $0x68] sm:$0xff]
    %v204 = vld [vmem:[#allocation7 + $0x70] sm:$0xff]
    %v205 = vld [vmem:[#allocation7 + $0x78] sm:$0xff]
    %v206 = vld [vmem:[%s4] sm:$0x1]
    %v208 = vlaneseq
    %v209 = vshrl.u32 %v208, 7
    %v210 = vsub.s32 0, %v209
    %v211 = vrot.slane %v206, %v210
    %213 = vmatprep.subr.mxu0 0.0
    %214 = vmatpush1.msra.mxu0 %v205
    %215 = vmatprep.subr.mxu0 0.0
    %216 = vmatpush1.msra.mxu0 %v204
    %217 = vmatprep.subr.mxu0 0.0
    %218 = vmatpush1.msra.mxu0 %v203
    %219 = vmatprep.subr.mxu0 0.0
    %220 = vmatpush1.msra.mxu0 %v202
    %221 = vmatprep.subr.mxu0 0.0
    %222 = vmatpush1.msra.mxu0 %v201
    %223 = vmatprep.subr.mxu0 0.0
    %224 = vmatpush1.msra.mxu0 %v200
    %225 = vmatprep.subr.mxu0 0.0
    %226 = vmatpush1.msra.mxu0 %v199
    %227 = vmatprep.subr.mxu0 0.0
    %228 = vmatpush1.msra.mxu0 %v198
    %229 = vmatprep.subr.mxu0 0.0
    %230 = vmatpush1.msra.mxu0 %v197
    %231 = vmatprep.subr.mxu0 0.0
    %232 = vmatpush1.msra.mxu0 %v196
    %233 = vmatprep.subr.mxu0 0.0
    %234 = vmatpush1.msra.mxu0 %v195
    %235 = vmatprep.subr.mxu0 0.0
    %236 = vmatpush1.msra.mxu0 %v194
    %237 = vmatprep.subr.mxu0 0.0
    %238 = vmatpush1.msra.mxu0 %v193
    %239 = vmatprep.subr.mxu0 0.0
    %240 = vmatpush1.msra.mxu0 %v192
    %241 = vmatprep.subr.mxu0 0.0
    %242 = vmatpush1.msra.mxu0 %v191
    %243 = vmatprep.subr.mxu0 0.0
    %244 = vmatpush1.msra.mxu0 %v190
    %245 = vmatprep.subr.mxu0 0.0
    %246 = vmatpush2.msra.mxu0 0.0
    %247 = vmatprep.subr.mxu0 0.0
    %248 = vmatpush2.msra.mxu0 0.0
    %249 = vmatprep.subr.mxu0 0.0
    %250 = vmatpush2.msra.mxu0 0.0
    %251 = vmatprep.subr.mxu0 0.0
    %252 = vmatpush2.msra.mxu0 0.0
    %253 = vmatprep.subr.mxu0 0.0
    %254 = vmatpush2.msra.mxu0 0.0
    %255 = vmatprep.subr.mxu0 0.0
    %256 = vmatpush2.msra.mxu0 0.0
    %257 = vmatprep.subr.mxu0 0.0
    %258 = vmatpush2.msra.mxu0 0.0
    %259 = vmatprep.subr.mxu0 0.0
    %260 = vmatpush2.msra.mxu0 0.0
    %261 = vmatprep.subr.mxu0 0.0
    %262 = vmatpush2.msra.mxu0 0.0
    %263 = vmatprep.subr.mxu0 0.0
    %264 = vmatpush2.msra.mxu0 0.0
    %265 = vmatprep.subr.mxu0 0.0
    %266 = vmatpush2.msra.mxu0 0.0
    %267 = vmatprep.subr.mxu0 0.0
    %268 = vmatpush2.msra.mxu0 0.0
    %269 = vmatprep.subr.mxu0 0.0
    %270 = vmatpush2.msra.mxu0 0.0
    %271 = vmatprep.subr.mxu0 0.0
    %272 = vmatpush2.msra.mxu0 0.0
    %273 = vmatprep.subr.mxu0 0.0
    %274 = vmatpush2.msra.mxu0 0.0
    %275 = vmatprep.subr.mxu0 0.0
    %276 = vmatpush2.msra.mxu0 0.0
    %277 = vmatprep.mubr.f32.mxu0 0.0
    %278 = vmatmul.mubr.f32.gmra.mxu0 %v188
    %v279 = vpop.f32.mrf.mxu0
    %v280 = vadd.f32 %v211, %v279
    %v281 = vpop.f32.mrf.mxu0
    %282 = vmatprep.mubr.f32.mxu0 0.0
    %283 = vmatmul.mubr.f32.gmra.mxu0 %v189
    %v284 = vpop.f32.mrf.mxu0
    %v285 = vadd.f32 %v211, %v284
    %v286 = vpop.f32.mrf.mxu0
    %287 = vdwg.mxu0
    %v288 = vmul.f32 %v280, 0.5
    %v289 = vmul.f32 %v285, 0.5
    %v290 = vtanh.pop %v288
    %v291 = vtanh.pop %v289
    %v292 = vmul.f32 %v290, 0.5
    %v293 = vmul.f32 %v291, 0.5
    %v294 = vadd.f32 %v292, 0.5
    %v295 = vadd.f32 %v293, 0.5
    %v296 = vld [vmem:[#allocation8] sm:$0xff]
    %v297 = vld [vmem:[#allocation8 + $0x8] sm:$0xff]
    %v298 = vld [vmem:[#allocation8 + $0x10] sm:$0xff]
    %v299 = vld [vmem:[#allocation8 + $0x18] sm:$0xff]
    %v300 = vld [vmem:[#allocation8 + $0x20] sm:$0xff]
    %v301 = vld [vmem:[#allocation8 + $0x28] sm:$0xff]
    %v302 = vld [vmem:[#allocation8 + $0x30] sm:$0xff]
    %v303 = vld [vmem:[#allocation8 + $0x38] sm:$0xff]
    %v304 = vld [vmem:[#allocation8 + $0x40] sm:$0xff]
    %v305 = vld [vmem:[#allocation8 + $0x48] sm:$0xff]
    %v306 = vld [vmem:[#allocation8 + $0x50] sm:$0xff]
    %v307 = vld [vmem:[#allocation8 + $0x58] sm:$0xff]
    %v308 = vld [vmem:[#allocation8 + $0x60] sm:$0xff]
    %v309 = vld [vmem:[#allocation8 + $0x68] sm:$0xff]
    %v310 = vld [vmem:[#allocation8 + $0x70] sm:$0xff]
    %v311 = vld [vmem:[#allocation8 + $0x78] sm:$0xff]
    %v312 = vld [vmem:[%s6] sm:$0x1]
    %v314 = vlaneseq
    %v315 = vshrl.u32 %v314, 7
    %v316 = vsub.s32 0, %v315
    %v317 = vrot.slane %v312, %v316
    %319 = vmatprep.subr.mxu0 0.0
    %320 = vmatpush1.msra.mxu0 %v311
    %321 = vmatprep.subr.mxu0 0.0
    %322 = vmatpush1.msra.mxu0 %v310
    %323 = vmatprep.subr.mxu0 0.0
    %324 = vmatpush1.msra.mxu0 %v309
    %325 = vmatprep.subr.mxu0 0.0
    %326 = vmatpush1.msra.mxu0 %v308
    %327 = vmatprep.subr.mxu0 0.0
    %328 = vmatpush1.msra.mxu0 %v307
    %329 = vmatprep.subr.mxu0 0.0
    %330 = vmatpush1.msra.mxu0 %v306
    %331 = vmatprep.subr.mxu0 0.0
    %332 = vmatpush1.msra.mxu0 %v305
    %333 = vmatprep.subr.mxu0 0.0
    %334 = vmatpush1.msra.mxu0 %v304
    %335 = vmatprep.subr.mxu0 0.0
    %336 = vmatpush1.msra.mxu0 %v303
    %337 = vmatprep.subr.mxu0 0.0
    %338 = vmatpush1.msra.mxu0 %v302
    %339 = vmatprep.subr.mxu0 0.0
    %340 = vmatpush1.msra.mxu0 %v301
    %341 = vmatprep.subr.mxu0 0.0
    %342 = vmatpush1.msra.mxu0 %v300
    %343 = vmatprep.subr.mxu0 0.0
    %344 = vmatpush1.msra.mxu0 %v299
    %345 = vmatprep.subr.mxu0 0.0
    %346 = vmatpush1.msra.mxu0 %v298
    %347 = vmatprep.subr.mxu0 0.0
    %348 = vmatpush1.msra.mxu0 %v297
    %349 = vmatprep.subr.mxu0 0.0
    %350 = vmatpush1.msra.mxu0 %v296
    %351 = vmatprep.subr.mxu0 0.0
    %352 = vmatpush2.msra.mxu0 0.0
    %353 = vmatprep.subr.mxu0 0.0
    %354 = vmatpush2.msra.mxu0 0.0
    %355 = vmatprep.subr.mxu0 0.0
    %356 = vmatpush2.msra.mxu0 0.0
    %357 = vmatprep.subr.mxu0 0.0
    %358 = vmatpush2.msra.mxu0 0.0
    %359 = vmatprep.subr.mxu0 0.0
    %360 = vmatpush2.msra.mxu0 0.0
    %361 = vmatprep.subr.mxu0 0.0
    %362 = vmatpush2.msra.mxu0 0.0
    %363 = vmatprep.subr.mxu0 0.0
    %364 = vmatpush2.msra.mxu0 0.0
    %365 = vmatprep.subr.mxu0 0.0
    %366 = vmatpush2.msra.mxu0 0.0
    %367 = vmatprep.subr.mxu0 0.0
    %368 = vmatpush2.msra.mxu0 0.0
    %369 = vmatprep.subr.mxu0 0.0
    %370 = vmatpush2.msra.mxu0 0.0
    %371 = vmatprep.subr.mxu0 0.0
    %372 = vmatpush2.msra.mxu0 0.0
    %373 = vmatprep.subr.mxu0 0.0
    %374 = vmatpush2.msra.mxu0 0.0
    %375 = vmatprep.subr.mxu0 0.0
    %376 = vmatpush2.msra.mxu0 0.0
    %377 = vmatprep.subr.mxu0 0.0
    %378 = vmatpush2.msra.mxu0 0.0
    %379 = vmatprep.subr.mxu0 0.0
    %380 = vmatpush2.msra.mxu0 0.0
    %381 = vmatprep.subr.mxu0 0.0
    %382 = vmatpush2.msra.mxu0 0.0
    %383 = vmatprep.mubr.f32.mxu0 0.0
    %384 = vmatmul.mubr.f32.gmra.mxu0 %v294
    %v385 = vpop.f32.mrf.mxu0
    %v386 = vadd.f32 %v317, %v385
    %v387 = vpop.f32.mrf.mxu0
    %388 = vmatprep.mubr.f32.mxu0 0.0
    %389 = vmatmul.mubr.f32.gmra.mxu0 %v295
    %v390 = vpop.f32.mrf.mxu0
    %v391 = vadd.f32 %v317, %v390
    %v392 = vpop.f32.mrf.mxu0
    %393 = vdwg.mxu0
    %394 = vst [vmem:[#allocation10] sm:$0xff] %v386
    %395 = vst [vmem:[#allocation10 + $0x8] sm:$0xff] %v391
    // Predicated region
    $region46: #{tpu_custom_call.1} parent=1 // pred_check
      _
    $region47: #{tpu_custom_call.1} parent=1 // pred_check_branch
      %397 = sbr.rel (0) target = $region49
    $region48: #{tpu_custom_call.1} parent=1 // pred_region
      %s399 = ssub.s32 256, 256
      %400 = vsyncadd [#allocation4], %s399
      %s401 = sshll.u32 [#allocation10], 4
      %s402 = int_to_ptr.vmem [resolvable:$true] %s401
      %407 = dma.vmem_to_hbm [thread:$0]  %s402, 256, %s7, [#allocation4], 128, 128, 8
    $region49: #{tpu_custom_call.1} parent=1 // pred_fallthru
      _
    // Predicated region
    $region50: #{tpu_custom_call.1} parent=1 // pred_check
      _
    $region51: #{tpu_custom_call.1} parent=1 // pred_check_branch
      %409 = sbr.rel (0) target = $region53
    $region52: #{tpu_custom_call.1} parent=1 // pred_region
      %410 = dma.done [#allocation4], 256
    $region53: #{tpu_custom_call.1} parent=1 // pred_fallthru
      _
    %411 = vsyncpa [#allocation3], 1
    %412 = vsyncpa [#allocation6], 1
    %413 = vsyncpa [#allocation9], 1
    %414 = vsyncpa [#allocation4], 1

</llo_original>
